<compile_context>
chip_gen: v5e
topology: v5e:2x2
jax: 0.10.0
libtpu: 0.0.40
codegen_flags: <defaults>
</compile_context>

<pallas_src>
import math
import jax
import jax.numpy as jnp
from jax.experimental import pallas as pl
from jax.experimental.pallas import tpu as pltpu


TB = 8  # batch tile (sublane multiple)


def _round_up(x, m):
    return (x + m - 1) // m * m


def score_kernel(u_ref, i_ref, o_ref):
    # u_ref: (TB, H)      bf16  -- resident across the inner I-tile axis
    # i_ref: (TB, TI, H)  bf16
    # o_ref: (TB, TI)     f32   -- lane-dense (TI is a multiple of 128)
    u = u_ref[...].astype(jnp.float32)   # explicit f32 upcast (v5e: no bf16 VPU)
    it = i_ref[...].astype(jnp.float32)
    # add_item_dim + score_dist(p=2): -(|u - i|^2).sum(-1)
    d = u[:, None, :] - it
    # NOTE: for very large H, switch to -(||u||^2 + ||i||^2 - 2*u.i) or an
    # H-chunked fori_loop accumulation to keep the (TB,TI,H) intermediate
    # from spilling the 64-vreg file.
    o_ref[...] = -jnp.sum(d * d, axis=-1)


def pallas_score(u_emb, i_emb):
    """u_emb: (B, H) bf16, i_emb: (B, I, H) bf16 -> scores (B, I) f32."""
    B, H = u_emb.shape
    _, I, _ = i_emb.shape

    TI = 512 if I >= 512 else 128          # lane-dense item tile
    B_pad = _round_up(B, TB)
    I_pad = _round_up(I, TI)

    if B_pad != B:
        u_emb = jnp.pad(u_emb, ((0, B_pad - B), (0, 0)))
        i_emb = jnp.pad(i_emb, ((0, B_pad - B), (0, 0), (0, 0)))
    if I_pad != I:
        i_emb = jnp.pad(i_emb, ((0, 0), (0, I_pad - I), (0, 0)))

    # Grid: (B-tiles, I-tiles); I-tiles innermost so the u block is re-used
    # (not re-DMA'd) across consecutive grid steps. Both axes are independent
    # -> "parallel" (megacore sharding on v7x, harmless on v5e/v6e).
    grid = (B_pad // TB, I_pad // TI)

    out = pl.pallas_call(
        score_kernel,
        out_shape=jax.ShapeDtypeStruct((B_pad, I_pad), jnp.float32),
        grid=grid,
        in_specs=[
            pl.BlockSpec((TB, H), lambda b, t: (b, 0)),        # u: depends on b only
            pl.BlockSpec((TB, TI, H), lambda b, t: (b, t, 0)),  # items
        ],
        out_specs=pl.BlockSpec((TB, TI), lambda b, t: (b, t)),
        compiler_params=pltpu.CompilerParams(
            dimension_semantics=("parallel", "parallel"),
            vmem_limit_bytes=32 * 1024 * 1024,
        ),
    )(u_emb, i_emb)
    return out[:B, :I]


class UserLongTermPreferenceModeling:
    """JAX/Pallas port of the PyTorch module.

    Embedding lookups (gather) are plain-JAX glue; the distance reduction
    (the hot path) runs in the tiled, pipelined Pallas kernel.
    """

    def __init__(self, n_users, n_items, n_hidden, key):
        k_i, k_u = jax.random.split(key)
        std = math.sqrt(0.1 / n_hidden) if n_hidden > 1 else 0.0
        i_w = jax.random.normal(k_i, (n_items, n_hidden), jnp.float32) * std
        i_w = i_w.at[0].set(0.0)          # padding_idx=0 -> zero row
        u_w = jax.random.normal(k_u, (n_users, n_hidden), jnp.float32) * std
        # bf16 storage halves HBM bytes of the gathered (B, I, H) tensor that
        # dominates this memory-bound kernel; compute is f32 inside the kernel.
        self.i_weight = i_w.astype(jnp.bfloat16)
        self.u_weight = u_w.astype(jnp.bfloat16)

    def forward(self, users, pred_items):
        return self.calculate_score(users, pred_items)

    def predict(self, users, pred_items):
        return self.calculate_score(users, pred_items)

    def calculate_score(self, users, pred_items):
        # TODO(synk): fuse the item-row gather into the kernel (scalar-prefetch
        # pred_items + manual DMA row-gather from i_weight in HBM) to drop the
        # extra HBM round-trip of the materialized (B, I, H) gather output.
        i_emb = jnp.take(self.i_weight, pred_items, axis=0)   # (B, I, H) bf16
        u_emb = jnp.take(self.u_weight, users, axis=0)        # (B, H)    bf16
        return pallas_score(u_emb, i_emb)                      # (B, I)    f32


def reference_score(model, users, pred_items):
    i_emb = jnp.take(model.i_weight, pred_items, axis=0).astype(jnp.float32)
    u_emb = jnp.take(model.u_weight, users, axis=0).astype(jnp.float32)
    return -jnp.sum(jnp.abs(u_emb[:, None, :] - i_emb) ** 2, axis=-1)


if __name__ == "__main__":
    key = jax.random.PRNGKey(0)
    k_model, k_users, k_items = jax.random.split(key, 3)

    n_users, n_items, n_hidden = 10, 20, 32
    B, I = 2, 8

    model = UserLongTermPreferenceModeling(n_users, n_items, n_hidden, k_model)

    users = jax.random.randint(k_users, (B,), 0, n_users, dtype=jnp.int32)
    pred_items = jax.random.randint(k_items, (B, I), 0, n_items, dtype=jnp.int32)

    out = model.forward(users, pred_items)
    out = jax.block_until_ready(out)

    ref = reference_score(model, users, pred_items)
    assert out.shape == (B, I), out.shape
    assert out.dtype == jnp.float32
    assert jnp.allclose(out, ref, atol=1e-5, rtol=1e-5), jnp.max(jnp.abs(out - ref))

    print("KERNEL_OK")
</pallas_src>

<mosaic_0001>
module attributes {stable_mosaic.version = 11 : i64} {
  func.func @score_kernel(%arg0: i32, %arg1: i32, %arg2: memref<8x32xbf16, #tpu.memory_space<vmem>>, %arg3: memref<8x128x32xbf16, #tpu.memory_space<vmem>>, %arg4: memref<8x128xf32, #tpu.memory_space<vmem>>) attributes {dimension_semantics = [#tpu.dimension_semantics<parallel>, #tpu.dimension_semantics<parallel>], iteration_bounds = array<i64: 1, 1>, scalar_prefetch = 0 : i64, scratch_operands = 0 : i64, tpu.core_type = #tpu.core_type<tc>, window_params = [{transform_indices = @transform_0, window_bounds = array<i64: 8, 32>}, {transform_indices = @transform_1, window_bounds = array<i64: 8, 128, 32>}, {transform_indices = @transform_2, window_bounds = array<i64: 8, 128>}]} {
    %c0 = arith.constant 0 : index
    %c0_0 = arith.constant 0 : index
    %0 = vector.load %arg2[%c0, %c0_0] : memref<8x32xbf16, #tpu.memory_space<vmem>>, vector<8x32xbf16>
    %1 = arith.extf %0 : vector<8x32xbf16> to vector<8x32xf32>
    %c0_1 = arith.constant 0 : index
    %c0_2 = arith.constant 0 : index
    %c0_3 = arith.constant 0 : index
    %2 = vector.load %arg3[%c0_1, %c0_2, %c0_3] : memref<8x128x32xbf16, #tpu.memory_space<vmem>>, vector<8x128x32xbf16>
    %3 = arith.extf %2 : vector<8x128x32xbf16> to vector<8x128x32xf32>
    %4 = vector.shape_cast %1 : vector<8x32xf32> to vector<8x1x32xf32>
    %5 = vector.broadcast %4 : vector<8x1x32xf32> to vector<8x128x32xf32>
    %6 = arith.subf %5, %3 : vector<8x128x32xf32>
    %7 = arith.mulf %6, %6 : vector<8x128x32xf32>
    %cst = arith.constant dense<0.000000e+00> : vector<8x128xf32>
    %8 = vector.multi_reduction <add>, %7, %cst [2] : vector<8x128x32xf32> to vector<8x128xf32>
    %cst_4 = arith.constant 0.000000e+00 : f32
    %9 = vector.broadcast %cst_4 : f32 to vector<8x128xf32>
    %10 = arith.subf %9, %8 : vector<8x128xf32>
    %c0_5 = arith.constant 0 : index
    %c0_6 = arith.constant 0 : index
    %11 = vector.load %arg4[%c0_5, %c0_6] : memref<8x128xf32, #tpu.memory_space<vmem>>, vector<8x128xf32>
    tpu.vector_store %arg4[%c0_5, %c0_6], %10 {strides = array<i32>} : memref<8x128xf32, #tpu.memory_space<vmem>>, vector<8x128xf32>,
    return
  }
  func.func @transform_0(%arg0: i32, %arg1: i32) -> (i32, i32) {
    %c0_i32 = arith.constant 0 : i32
    %c0_i32_0 = arith.constant 0 : i32
    return %arg0, %c0_i32 : i32, i32
  }
  func.func @transform_1(%arg0: i32, %arg1: i32) -> (i32, i32, i32) {
    %c0_i32 = arith.constant 0 : i32
    %c0_i32_0 = arith.constant 0 : i32
    return %arg0, %arg1, %c0_i32 : i32, i32, i32
  }
  func.func @transform_2(%arg0: i32, %arg1: i32) -> (i32, i32) {
    %c0_i32 = arith.constant 0 : i32
    return %arg0, %arg1 : i32, i32
  }
}

</mosaic_0001>

<llo_original>
// kernel: tpu_custom_call.1
$region0: #{tpu_custom_call.1}
  #allocation0 [shape = 'u32[]', space=smem, size = 0x4, offset = 0x4, fixed_abs, tag = 'smem constant byte address 0x4 - core index']
  #allocation1 [shape = 'u32[72,128]{1,0:T(1,128)}', space=vmem, size = 0x9000, scoped, tag = 'internal scratch']
  %s0 = inlined_call_operand.vmem [shape: bf16[8,32], index: 0, kind: input, shape index: {}]
  %s1 = inlined_call_operand.vmem [shape: bf16[8,128,32], index: 1, kind: input, shape index: {}]
  %s2 = inlined_call_operand.hbm [shape: f32[8,128], index: 2, kind: output, shape index: {}]
  %s3 = sld [smem:[#allocation0]]
  $region18: #{tpu_custom_call.1} parent=0
    _
  %s5 = ssub.s32 1, %s3
  %s6 = scalar_select 0, %s5, %s3
  $region1: #{tpu_custom_call.1} parent=0
    #allocation2 [shape = 'u8[4096]{0}', space=vmem, size = 0x1000, scoped, tag = 'output window, operand 0, single buffered']
    #allocation3 [shape = 's32[1]{0}', space=sflag, size = 0x4, scoped, tag = 'scoped memory for tpu_custom_call.1']
    %7 = vsyncpa [#allocation3], 0
    // Predicated region
    $region2: #{tpu_custom_call.1} parent=1 // pred_check
      _
    $region3: #{tpu_custom_call.1} parent=1 // pred_check_branch
      %9 = sbr.rel (0) target = $region5
    $region4: #{tpu_custom_call.1} parent=1 // pred_region
      _
    $region5: #{tpu_custom_call.1} parent=1 // pred_fallthru
      _
    // Predicated region
    $region6: #{tpu_custom_call.1} parent=1 // pred_check
      _
    $region7: #{tpu_custom_call.1} parent=1 // pred_check_branch
      %11 = sbr.rel (0) target = $region9
    $region8: #{tpu_custom_call.1} parent=1 // pred_region
      _
    $region9: #{tpu_custom_call.1} parent=1 // pred_fallthru
      _
    %v12 = vld [vmem:[%s0] sm:$0xf]
    %v13 = vunpack.c.l.bf16 %v12
    %v14 = vld [vmem:[%s1] sm:$0xf]
    %v15 = vld [vmem:[%s1 + $0x4] sm:$0xf]
    %v16 = vld [vmem:[%s1 + $0x8] sm:$0xf]
    %v17 = vld [vmem:[%s1 + $0xc] sm:$0xf]
    %v18 = vld [vmem:[%s1 + $0x10] sm:$0xf]
    %v19 = vld [vmem:[%s1 + $0x14] sm:$0xf]
    %v20 = vld [vmem:[%s1 + $0x18] sm:$0xf]
    %v21 = vld [vmem:[%s1 + $0x1c] sm:$0xf]
    %v22 = vld [vmem:[%s1 + $0x20] sm:$0xf]
    %v23 = vld [vmem:[%s1 + $0x24] sm:$0xf]
    %v24 = vld [vmem:[%s1 + $0x28] sm:$0xf]
    %v25 = vld [vmem:[%s1 + $0x2c] sm:$0xf]
    %v26 = vld [vmem:[%s1 + $0x30] sm:$0xf]
    %v27 = vld [vmem:[%s1 + $0x34] sm:$0xf]
    %v28 = vld [vmem:[%s1 + $0x38] sm:$0xf]
    %v29 = vld [vmem:[%s1 + $0x3c] sm:$0xf]
    %v30 = vld [vmem:[%s1 + $0x40] sm:$0xf]
    %v31 = vld [vmem:[%s1 + $0x44] sm:$0xf]
    %v32 = vld [vmem:[%s1 + $0x48] sm:$0xf]
    %v33 = vld [vmem:[%s1 + $0x4c] sm:$0xf]
    %v34 = vld [vmem:[%s1 + $0x50] sm:$0xf]
    %v35 = vld [vmem:[%s1 + $0x54] sm:$0xf]
    %v36 = vld [vmem:[%s1 + $0x58] sm:$0xf]
    %v37 = vld [vmem:[%s1 + $0x5c] sm:$0xf]
    %v38 = vld [vmem:[%s1 + $0x60] sm:$0xf]
    %v39 = vld [vmem:[%s1 + $0x64] sm:$0xf]
    %v40 = vld [vmem:[%s1 + $0x68] sm:$0xf]
    %v41 = vld [vmem:[%s1 + $0x6c] sm:$0xf]
    %v42 = vld [vmem:[%s1 + $0x70] sm:$0xf]
    %v43 = vld [vmem:[%s1 + $0x74] sm:$0xf]
    %v44 = vld [vmem:[%s1 + $0x78] sm:$0xf]
    %v45 = vld [vmem:[%s1 + $0x7c] sm:$0xf]
    %v46 = vld [vmem:[%s1 + $0x80] sm:$0xf]
    %v47 = vld [vmem:[%s1 + $0x84] sm:$0xf]
    %v48 = vld [vmem:[%s1 + $0x88] sm:$0xf]
    %v49 = vld [vmem:[%s1 + $0x8c] sm:$0xf]
    %v50 = vld [vmem:[%s1 + $0x90] sm:$0xf]
    %v51 = vld [vmem:[%s1 + $0x94] sm:$0xf]
    %v52 = vld [vmem:[%s1 + $0x98] sm:$0xf]
    %v53 = vld [vmem:[%s1 + $0x9c] sm:$0xf]
    %v54 = vld [vmem:[%s1 + $0xa0] sm:$0xf]
    %v55 = vld [vmem:[%s1 + $0xa4] sm:$0xf]
    %v56 = vld [vmem:[%s1 + $0xa8] sm:$0xf]
    %v57 = vld [vmem:[%s1 + $0xac] sm:$0xf]
    %v58 = vld [vmem:[%s1 + $0xb0] sm:$0xf]
    %v59 = vld [vmem:[%s1 + $0xb4] sm:$0xf]
    %v60 = vld [vmem:[%s1 + $0xb8] sm:$0xf]
    %v61 = vld [vmem:[%s1 + $0xbc] sm:$0xf]
    %v62 = vld [vmem:[%s1 + $0xc0] sm:$0xf]
    %v63 = vld [vmem:[%s1 + $0xc4] sm:$0xf]
    %v64 = vld [vmem:[%s1 + $0xc8] sm:$0xf]
    %v65 = vld [vmem:[%s1 + $0xcc] sm:$0xf]
    %v66 = vld [vmem:[%s1 + $0xd0] sm:$0xf]
    %v67 = vld [vmem:[%s1 + $0xd4] sm:$0xf]
    %v68 = vld [vmem:[%s1 + $0xd8] sm:$0xf]
    %v69 = vld [vmem:[%s1 + $0xdc] sm:$0xf]
    %v70 = vld [vmem:[%s1 + $0xe0] sm:$0xf]
    %v71 = vld [vmem:[%s1 + $0xe4] sm:$0xf]
    %v72 = vld [vmem:[%s1 + $0xe8] sm:$0xf]
    %v73 = vld [vmem:[%s1 + $0xec] sm:$0xf]
    %v74 = vld [vmem:[%s1 + $0xf0] sm:$0xf]
    %v75 = vld [vmem:[%s1 + $0xf4] sm:$0xf]
    %v76 = vld [vmem:[%s1 + $0xf8] sm:$0xf]
    %v77 = vld [vmem:[%s1 + $0xfc] sm:$0xf]
    %v78 = vld [vmem:[%s1 + $0x100] sm:$0xf]
    %v79 = vld [vmem:[%s1 + $0x104] sm:$0xf]
    %v80 = vld [vmem:[%s1 + $0x108] sm:$0xf]
    %v81 = vld [vmem:[%s1 + $0x10c] sm:$0xf]
    %v82 = vld [vmem:[%s1 + $0x110] sm:$0xf]
    %v83 = vld [vmem:[%s1 + $0x114] sm:$0xf]
    %v84 = vld [vmem:[%s1 + $0x118] sm:$0xf]
    %v85 = vld [vmem:[%s1 + $0x11c] sm:$0xf]
    %v86 = vld [vmem:[%s1 + $0x120] sm:$0xf]
    %v87 = vld [vmem:[%s1 + $0x124] sm:$0xf]
    %v88 = vld [vmem:[%s1 + $0x128] sm:$0xf]
    %v89 = vld [vmem:[%s1 + $0x12c] sm:$0xf]
    %v90 = vld [vmem:[%s1 + $0x130] sm:$0xf]
    %v91 = vld [vmem:[%s1 + $0x134] sm:$0xf]
    %v92 = vld [vmem:[%s1 + $0x138] sm:$0xf]
    %v93 = vld [vmem:[%s1 + $0x13c] sm:$0xf]
    %v94 = vld [vmem:[%s1 + $0x140] sm:$0xf]
    %v95 = vld [vmem:[%s1 + $0x144] sm:$0xf]
    %v96 = vld [vmem:[%s1 + $0x148] sm:$0xf]
    %v97 = vld [vmem:[%s1 + $0x14c] sm:$0xf]
    %v98 = vld [vmem:[%s1 + $0x150] sm:$0xf]
    %v99 = vld [vmem:[%s1 + $0x154] sm:$0xf]
    %v100 = vld [vmem:[%s1 + $0x158] sm:$0xf]
    %v101 = vld [vmem:[%s1 + $0x15c] sm:$0xf]
    %v102 = vld [vmem:[%s1 + $0x160] sm:$0xf]
    %v103 = vld [vmem:[%s1 + $0x164] sm:$0xf]
    %v104 = vld [vmem:[%s1 + $0x168] sm:$0xf]
    %v105 = vld [vmem:[%s1 + $0x16c] sm:$0xf]
    %v106 = vld [vmem:[%s1 + $0x170] sm:$0xf]
    %v107 = vld [vmem:[%s1 + $0x174] sm:$0xf]
    %v108 = vld [vmem:[%s1 + $0x178] sm:$0xf]
    %v109 = vld [vmem:[%s1 + $0x17c] sm:$0xf]
    %v110 = vld [vmem:[%s1 + $0x180] sm:$0xf]
    %v111 = vld [vmem:[%s1 + $0x184] sm:$0xf]
    %v112 = vld [vmem:[%s1 + $0x188] sm:$0xf]
    %v113 = vld [vmem:[%s1 + $0x18c] sm:$0xf]
    %v114 = vld [vmem:[%s1 + $0x190] sm:$0xf]
    %v115 = vld [vmem:[%s1 + $0x194] sm:$0xf]
    %v116 = vld [vmem:[%s1 + $0x198] sm:$0xf]
    %v117 = vld [vmem:[%s1 + $0x19c] sm:$0xf]
    %v118 = vld [vmem:[%s1 + $0x1a0] sm:$0xf]
    %v119 = vld [vmem:[%s1 + $0x1a4] sm:$0xf]
    %v120 = vld [vmem:[%s1 + $0x1a8] sm:$0xf]
    %v121 = vld [vmem:[%s1 + $0x1ac] sm:$0xf]
    %v122 = vld [vmem:[%s1 + $0x1b0] sm:$0xf]
    %v123 = vld [vmem:[%s1 + $0x1b4] sm:$0xf]
    %v124 = vld [vmem:[%s1 + $0x1b8] sm:$0xf]
    %v125 = vld [vmem:[%s1 + $0x1bc] sm:$0xf]
    %v126 = vld [vmem:[%s1 + $0x1c0] sm:$0xf]
    %v127 = vld [vmem:[%s1 + $0x1c4] sm:$0xf]
    %v128 = vld [vmem:[%s1 + $0x1c8] sm:$0xf]
    %v129 = vld [vmem:[%s1 + $0x1cc] sm:$0xf]
    %v130 = vld [vmem:[%s1 + $0x1d0] sm:$0xf]
    %v131 = vld [vmem:[%s1 + $0x1d4] sm:$0xf]
    %v132 = vld [vmem:[%s1 + $0x1d8] sm:$0xf]
    %v133 = vld [vmem:[%s1 + $0x1dc] sm:$0xf]
    %v134 = vld [vmem:[%s1 + $0x1e0] sm:$0xf]
    %v135 = vld [vmem:[%s1 + $0x1e4] sm:$0xf]
    %v136 = vld [vmem:[%s1 + $0x1e8] sm:$0xf]
    %v137 = vld [vmem:[%s1 + $0x1ec] sm:$0xf]
    %v138 = vld [vmem:[%s1 + $0x1f0] sm:$0xf]
    %v139 = vld [vmem:[%s1 + $0x1f4] sm:$0xf]
    %v140 = vld [vmem:[%s1 + $0x1f8] sm:$0xf]
    %v141 = vld [vmem:[%s1 + $0x1fc] sm:$0xf]
    %v142 = vunpack.c.l.bf16 %v14
    %v143 = vunpack.c.l.bf16 %v15
    %v144 = vunpack.c.l.bf16 %v16
    %v145 = vunpack.c.l.bf16 %v17
    %v146 = vunpack.c.l.bf16 %v18
    %v147 = vunpack.c.l.bf16 %v19
    %v148 = vunpack.c.l.bf16 %v20
    %v149 = vunpack.c.l.bf16 %v21
    %v150 = vunpack.c.l.bf16 %v22
    %v151 = vunpack.c.l.bf16 %v23
    %v152 = vunpack.c.l.bf16 %v24
    %v153 = vunpack.c.l.bf16 %v25
    %v154 = vunpack.c.l.bf16 %v26
    %v155 = vunpack.c.l.bf16 %v27
    %v156 = vunpack.c.l.bf16 %v28
    %v157 = vunpack.c.l.bf16 %v29
    %v158 = vunpack.c.l.bf16 %v30
    %v159 = vunpack.c.l.bf16 %v31
    %v160 = vunpack.c.l.bf16 %v32
    %v161 = vunpack.c.l.bf16 %v33
    %v162 = vunpack.c.l.bf16 %v34
    %v163 = vunpack.c.l.bf16 %v35
    %v164 = vunpack.c.l.bf16 %v36
    %v165 = vunpack.c.l.bf16 %v37
    %v166 = vunpack.c.l.bf16 %v38
    %v167 = vunpack.c.l.bf16 %v39
    %v168 = vunpack.c.l.bf16 %v40
    %v169 = vunpack.c.l.bf16 %v41
    %v170 = vunpack.c.l.bf16 %v42
    %v171 = vunpack.c.l.bf16 %v43
    %v172 = vunpack.c.l.bf16 %v44
    %v173 = vunpack.c.l.bf16 %v45
    %v174 = vunpack.c.l.bf16 %v46
    %v175 = vunpack.c.l.bf16 %v47
    %v176 = vunpack.c.l.bf16 %v48
    %v177 = vunpack.c.l.bf16 %v49
    %v178 = vunpack.c.l.bf16 %v50
    %v179 = vunpack.c.l.bf16 %v51
    %v180 = vunpack.c.l.bf16 %v52
    %v181 = vunpack.c.l.bf16 %v53
    %v182 = vunpack.c.l.bf16 %v54
    %v183 = vunpack.c.l.bf16 %v55
    %v184 = vunpack.c.l.bf16 %v56
    %v185 = vunpack.c.l.bf16 %v57
    %v186 = vunpack.c.l.bf16 %v58
    %v187 = vunpack.c.l.bf16 %v59
    %v188 = vunpack.c.l.bf16 %v60
    %v189 = vunpack.c.l.bf16 %v61
    %v190 = vunpack.c.l.bf16 %v62
    %v191 = vunpack.c.l.bf16 %v63
    %v192 = vunpack.c.l.bf16 %v64
    %v193 = vunpack.c.l.bf16 %v65
    %v194 = vunpack.c.l.bf16 %v66
    %v195 = vunpack.c.l.bf16 %v67
    %v196 = vunpack.c.l.bf16 %v68
    %v197 = vunpack.c.l.bf16 %v69
    %v198 = vunpack.c.l.bf16 %v70
    %v199 = vunpack.c.l.bf16 %v71
    %v200 = vunpack.c.l.bf16 %v72
    %v201 = vunpack.c.l.bf16 %v73
    %v202 = vunpack.c.l.bf16 %v74
    %v203 = vunpack.c.l.bf16 %v75
    %v204 = vunpack.c.l.bf16 %v76
    %v205 = vunpack.c.l.bf16 %v77
    %v206 = vunpack.c.l.bf16 %v78
    %v207 = vunpack.c.l.bf16 %v79
    %v208 = vunpack.c.l.bf16 %v80
    %v209 = vunpack.c.l.bf16 %v81
    %v210 = vunpack.c.l.bf16 %v82
    %v211 = vunpack.c.l.bf16 %v83
    %v212 = vunpack.c.l.bf16 %v84
    %v213 = vunpack.c.l.bf16 %v85
    %v214 = vunpack.c.l.bf16 %v86
    %v215 = vunpack.c.l.bf16 %v87
    %v216 = vunpack.c.l.bf16 %v88
    %v217 = vunpack.c.l.bf16 %v89
    %v218 = vunpack.c.l.bf16 %v90
    %v219 = vunpack.c.l.bf16 %v91
    %v220 = vunpack.c.l.bf16 %v92
    %v221 = vunpack.c.l.bf16 %v93
    %v222 = vunpack.c.l.bf16 %v94
    %v223 = vunpack.c.l.bf16 %v95
    %v224 = vunpack.c.l.bf16 %v96
    %v225 = vunpack.c.l.bf16 %v97
    %v226 = vunpack.c.l.bf16 %v98
    %v227 = vunpack.c.l.bf16 %v99
    %v228 = vunpack.c.l.bf16 %v100
    %v229 = vunpack.c.l.bf16 %v101
    %v230 = vunpack.c.l.bf16 %v102
    %v231 = vunpack.c.l.bf16 %v103
    %v232 = vunpack.c.l.bf16 %v104
    %v233 = vunpack.c.l.bf16 %v105
    %v234 = vunpack.c.l.bf16 %v106
    %v235 = vunpack.c.l.bf16 %v107
    %v236 = vunpack.c.l.bf16 %v108
    %v237 = vunpack.c.l.bf16 %v109
    %v238 = vunpack.c.l.bf16 %v110
    %v239 = vunpack.c.l.bf16 %v111
    %v240 = vunpack.c.l.bf16 %v112
    %v241 = vunpack.c.l.bf16 %v113
    %v242 = vunpack.c.l.bf16 %v114
    %v243 = vunpack.c.l.bf16 %v115
    %v244 = vunpack.c.l.bf16 %v116
    %v245 = vunpack.c.l.bf16 %v117
    %v246 = vunpack.c.l.bf16 %v118
    %v247 = vunpack.c.l.bf16 %v119
    %v248 = vunpack.c.l.bf16 %v120
    %v249 = vunpack.c.l.bf16 %v121
    %v250 = vunpack.c.l.bf16 %v122
    %v251 = vunpack.c.l.bf16 %v123
    %v252 = vunpack.c.l.bf16 %v124
    %v253 = vunpack.c.l.bf16 %v125
    %v254 = vunpack.c.l.bf16 %v126
    %v255 = vunpack.c.l.bf16 %v127
    %v256 = vunpack.c.l.bf16 %v128
    %v257 = vunpack.c.l.bf16 %v129
    %v258 = vunpack.c.l.bf16 %v130
    %v259 = vunpack.c.l.bf16 %v131
    %v260 = vunpack.c.l.bf16 %v132
    %v261 = vunpack.c.l.bf16 %v133
    %v262 = vunpack.c.l.bf16 %v134
    %v263 = vunpack.c.l.bf16 %v135
    %v264 = vunpack.c.l.bf16 %v136
    %v265 = vunpack.c.l.bf16 %v137
    %v266 = vunpack.c.l.bf16 %v138
    %v267 = vunpack.c.l.bf16 %v139
    %v268 = vunpack.c.l.bf16 %v140
    %v269 = vunpack.c.l.bf16 %v141
    %v271 = vrot.slane %v13, 1
    %v272 = vrot.slane %v13, 2
    %v273 = vrot.slane %v13, 3
    %v274 = vrot.slane %v13, 4
    %v275 = vrot.slane %v13, 5
    %v276 = vrot.slane %v13, 6
    %v277 = vrot.slane %v13, 7
    %v278 = vperm.slane %v13, 0
    %v279 = vperm.slane %v271, 0
    %v280 = vperm.slane %v272, 0
    %v281 = vperm.slane %v273, 0
    %v282 = vperm.slane %v274, 0
    %v283 = vperm.slane %v275, 0
    %v284 = vperm.slane %v276, 0
    %v285 = vperm.slane %v277, 0
    %v294 = vsub.f32 %v278, %v142
    %v295 = vsub.f32 %v278, %v143
    %v296 = vsub.f32 %v278, %v144
    %v297 = vsub.f32 %v278, %v145
    %v298 = vsub.f32 %v278, %v146
    %v299 = vsub.f32 %v278, %v147
    %v300 = vsub.f32 %v278, %v148
    %v301 = vsub.f32 %v278, %v149
    %v302 = vsub.f32 %v278, %v150
    %v303 = vsub.f32 %v278, %v151
    %v304 = vsub.f32 %v278, %v152
    %v305 = vsub.f32 %v278, %v153
    %v306 = vsub.f32 %v278, %v154
    %v307 = vsub.f32 %v278, %v155
    %v308 = vsub.f32 %v278, %v156
    %v309 = vsub.f32 %v278, %v157
    %v310 = vsub.f32 %v279, %v158
    %v311 = vsub.f32 %v279, %v159
    %v312 = vsub.f32 %v279, %v160
    %v313 = vsub.f32 %v279, %v161
    %v314 = vsub.f32 %v279, %v162
    %v315 = vsub.f32 %v279, %v163
    %v316 = vsub.f32 %v279, %v164
    %v317 = vsub.f32 %v279, %v165
    %v318 = vsub.f32 %v279, %v166
    %v319 = vsub.f32 %v279, %v167
    %v320 = vsub.f32 %v279, %v168
    %v321 = vsub.f32 %v279, %v169
    %v322 = vsub.f32 %v279, %v170
    %v323 = vsub.f32 %v279, %v171
    %v324 = vsub.f32 %v279, %v172
    %v325 = vsub.f32 %v279, %v173
    %v326 = vsub.f32 %v280, %v174
    %v327 = vsub.f32 %v280, %v175
    %v328 = vsub.f32 %v280, %v176
    %v329 = vsub.f32 %v280, %v177
    %v330 = vsub.f32 %v280, %v178
    %v331 = vsub.f32 %v280, %v179
    %v332 = vsub.f32 %v280, %v180
    %v333 = vsub.f32 %v280, %v181
    %v334 = vsub.f32 %v280, %v182
    %v335 = vsub.f32 %v280, %v183
    %v336 = vsub.f32 %v280, %v184
    %v337 = vsub.f32 %v280, %v185
    %v338 = vsub.f32 %v280, %v186
    %v339 = vsub.f32 %v280, %v187
    %v340 = vsub.f32 %v280, %v188
    %v341 = vsub.f32 %v280, %v189
    %v342 = vsub.f32 %v281, %v190
    %v343 = vsub.f32 %v281, %v191
    %v344 = vsub.f32 %v281, %v192
    %v345 = vsub.f32 %v281, %v193
    %v346 = vsub.f32 %v281, %v194
    %v347 = vsub.f32 %v281, %v195
    %v348 = vsub.f32 %v281, %v196
    %v349 = vsub.f32 %v281, %v197
    %v350 = vsub.f32 %v281, %v198
    %v351 = vsub.f32 %v281, %v199
    %v352 = vsub.f32 %v281, %v200
    %v353 = vsub.f32 %v281, %v201
    %v354 = vsub.f32 %v281, %v202
    %v355 = vsub.f32 %v281, %v203
    %v356 = vsub.f32 %v281, %v204
    %v357 = vsub.f32 %v281, %v205
    %v358 = vsub.f32 %v282, %v206
    %v359 = vsub.f32 %v282, %v207
    %v360 = vsub.f32 %v282, %v208
    %v361 = vsub.f32 %v282, %v209
    %v362 = vsub.f32 %v282, %v210
    %v363 = vsub.f32 %v282, %v211
    %v364 = vsub.f32 %v282, %v212
    %v365 = vsub.f32 %v282, %v213
    %v366 = vsub.f32 %v282, %v214
    %v367 = vsub.f32 %v282, %v215
    %v368 = vsub.f32 %v282, %v216
    %v369 = vsub.f32 %v282, %v217
    %v370 = vsub.f32 %v282, %v218
    %v371 = vsub.f32 %v282, %v219
    %v372 = vsub.f32 %v282, %v220
    %v373 = vsub.f32 %v282, %v221
    %v374 = vsub.f32 %v283, %v222
    %v375 = vsub.f32 %v283, %v223
    %v376 = vsub.f32 %v283, %v224
    %v377 = vsub.f32 %v283, %v225
    %v378 = vsub.f32 %v283, %v226
    %v379 = vsub.f32 %v283, %v227
    %v380 = vsub.f32 %v283, %v228
    %v381 = vsub.f32 %v283, %v229
    %v382 = vsub.f32 %v283, %v230
    %v383 = vsub.f32 %v283, %v231
    %v384 = vsub.f32 %v283, %v232
    %v385 = vsub.f32 %v283, %v233
    %v386 = vsub.f32 %v283, %v234
    %v387 = vsub.f32 %v283, %v235
    %v388 = vsub.f32 %v283, %v236
    %v389 = vsub.f32 %v283, %v237
    %v390 = vsub.f32 %v284, %v238
    %v391 = vsub.f32 %v284, %v239
    %v392 = vsub.f32 %v284, %v240
    %v393 = vsub.f32 %v284, %v241
    %v394 = vsub.f32 %v284, %v242
    %v395 = vsub.f32 %v284, %v243
    %v396 = vsub.f32 %v284, %v244
    %v397 = vsub.f32 %v284, %v245
    %v398 = vsub.f32 %v284, %v246
    %v399 = vsub.f32 %v284, %v247
    %v400 = vsub.f32 %v284, %v248
    %v401 = vsub.f32 %v284, %v249
    %v402 = vsub.f32 %v284, %v250
    %v403 = vsub.f32 %v284, %v251
    %v404 = vsub.f32 %v284, %v252
    %v405 = vsub.f32 %v284, %v253
    %v406 = vsub.f32 %v285, %v254
    %v407 = vsub.f32 %v285, %v255
    %v408 = vsub.f32 %v285, %v256
    %v409 = vsub.f32 %v285, %v257
    %v410 = vsub.f32 %v285, %v258
    %v411 = vsub.f32 %v285, %v259
    %v412 = vsub.f32 %v285, %v260
    %v413 = vsub.f32 %v285, %v261
    %v414 = vsub.f32 %v285, %v262
    %v415 = vsub.f32 %v285, %v263
    %v416 = vsub.f32 %v285, %v264
    %v417 = vsub.f32 %v285, %v265
    %v418 = vsub.f32 %v285, %v266
    %v419 = vsub.f32 %v285, %v267
    %v420 = vsub.f32 %v285, %v268
    %v421 = vsub.f32 %v285, %v269
    %v422 = vmul.f32 %v294, %v294
    %v423 = vmul.f32 %v295, %v295
    %v424 = vmul.f32 %v296, %v296
    %v425 = vmul.f32 %v297, %v297
    %v426 = vmul.f32 %v298, %v298
    %v427 = vmul.f32 %v299, %v299
    %v428 = vmul.f32 %v300, %v300
    %v429 = vmul.f32 %v301, %v301
    %v430 = vmul.f32 %v302, %v302
    %v431 = vmul.f32 %v303, %v303
    %v432 = vmul.f32 %v304, %v304
    %v433 = vmul.f32 %v305, %v305
    %v434 = vmul.f32 %v306, %v306
    %v435 = vmul.f32 %v307, %v307
    %v436 = vmul.f32 %v308, %v308
    %v437 = vmul.f32 %v309, %v309
    %v438 = vmul.f32 %v310, %v310
    %v439 = vmul.f32 %v311, %v311
    %v440 = vmul.f32 %v312, %v312
    %v441 = vmul.f32 %v313, %v313
    %v442 = vmul.f32 %v314, %v314
    %v443 = vmul.f32 %v315, %v315
    %v444 = vmul.f32 %v316, %v316
    %v445 = vmul.f32 %v317, %v317
    %v446 = vmul.f32 %v318, %v318
    %v447 = vmul.f32 %v319, %v319
    %v448 = vmul.f32 %v320, %v320
    %v449 = vmul.f32 %v321, %v321
    %v450 = vmul.f32 %v322, %v322
    %v451 = vmul.f32 %v323, %v323
    %v452 = vmul.f32 %v324, %v324
    %v453 = vmul.f32 %v325, %v325
    %v454 = vmul.f32 %v326, %v326
    %v455 = vmul.f32 %v327, %v327
    %v456 = vmul.f32 %v328, %v328
    %v457 = vmul.f32 %v329, %v329
    %v458 = vmul.f32 %v330, %v330
    %v459 = vmul.f32 %v331, %v331
    %v460 = vmul.f32 %v332, %v332
    %v461 = vmul.f32 %v333, %v333
    %v462 = vmul.f32 %v334, %v334
    %v463 = vmul.f32 %v335, %v335
    %v464 = vmul.f32 %v336, %v336
    %v465 = vmul.f32 %v337, %v337
    %v466 = vmul.f32 %v338, %v338
    %v467 = vmul.f32 %v339, %v339
    %v468 = vmul.f32 %v340, %v340
    %v469 = vmul.f32 %v341, %v341
    %v470 = vmul.f32 %v342, %v342
    %v471 = vmul.f32 %v343, %v343
    %v472 = vmul.f32 %v344, %v344
    %v473 = vmul.f32 %v345, %v345
    %v474 = vmul.f32 %v346, %v346
    %v475 = vmul.f32 %v347, %v347
    %v476 = vmul.f32 %v348, %v348
    %v477 = vmul.f32 %v349, %v349
    %v478 = vmul.f32 %v350, %v350
    %v479 = vmul.f32 %v351, %v351
    %v480 = vmul.f32 %v352, %v352
    %v481 = vmul.f32 %v353, %v353
    %v482 = vmul.f32 %v354, %v354
    %v483 = vmul.f32 %v355, %v355
    %v484 = vmul.f32 %v356, %v356
    %v485 = vmul.f32 %v357, %v357
    %v486 = vmul.f32 %v358, %v358
    %v487 = vmul.f32 %v359, %v359
    %v488 = vmul.f32 %v360, %v360
    %v489 = vmul.f32 %v361, %v361
    %v490 = vmul.f32 %v362, %v362
    %v491 = vmul.f32 %v363, %v363
    %v492 = vmul.f32 %v364, %v364
    %v493 = vmul.f32 %v365, %v365
    %v494 = vmul.f32 %v366, %v366
    %v495 = vmul.f32 %v367, %v367
    %v496 = vmul.f32 %v368, %v368
    %v497 = vmul.f32 %v369, %v369
    %v498 = vmul.f32 %v370, %v370
    %v499 = vmul.f32 %v371, %v371
    %v500 = vmul.f32 %v372, %v372
    %v501 = vmul.f32 %v373, %v373
    %v502 = vmul.f32 %v374, %v374
    %v503 = vmul.f32 %v375, %v375
    %v504 = vmul.f32 %v376, %v376
    %v505 = vmul.f32 %v377, %v377
    %v506 = vmul.f32 %v378, %v378
    %v507 = vmul.f32 %v379, %v379
    %v508 = vmul.f32 %v380, %v380
    %v509 = vmul.f32 %v381, %v381
    %v510 = vmul.f32 %v382, %v382
    %v511 = vmul.f32 %v383, %v383
    %v512 = vmul.f32 %v384, %v384
    %v513 = vmul.f32 %v385, %v385
    %v514 = vmul.f32 %v386, %v386
    %v515 = vmul.f32 %v387, %v387
    %v516 = vmul.f32 %v388, %v388
    %v517 = vmul.f32 %v389, %v389
    %v518 = vmul.f32 %v390, %v390
    %v519 = vmul.f32 %v391, %v391
    %v520 = vmul.f32 %v392, %v392
    %v521 = vmul.f32 %v393, %v393
    %v522 = vmul.f32 %v394, %v394
    %v523 = vmul.f32 %v395, %v395
    %v524 = vmul.f32 %v396, %v396
    %v525 = vmul.f32 %v397, %v397
    %v526 = vmul.f32 %v398, %v398
    %v527 = vmul.f32 %v399, %v399
    %v528 = vmul.f32 %v400, %v400
    %v529 = vmul.f32 %v401, %v401
    %v530 = vmul.f32 %v402, %v402
    %v531 = vmul.f32 %v403, %v403
    %v532 = vmul.f32 %v404, %v404
    %v533 = vmul.f32 %v405, %v405
    %v534 = vmul.f32 %v406, %v406
    %v535 = vmul.f32 %v407, %v407
    %v536 = vmul.f32 %v408, %v408
    %v537 = vmul.f32 %v409, %v409
    %v538 = vmul.f32 %v410, %v410
    %v539 = vmul.f32 %v411, %v411
    %v540 = vmul.f32 %v412, %v412
    %v541 = vmul.f32 %v413, %v413
    %v542 = vmul.f32 %v414, %v414
    %v543 = vmul.f32 %v415, %v415
    %v544 = vmul.f32 %v416, %v416
    %v545 = vmul.f32 %v417, %v417
    %v546 = vmul.f32 %v418, %v418
    %v547 = vmul.f32 %v419, %v419
    %v548 = vmul.f32 %v420, %v420
    %v549 = vmul.f32 %v421, %v421
    %vm550 = vcmask 261120
    %v551 = vsel %vm550, %v422, 0.0
    %552 = vadd.xlane.f32.xlu0 %v551
    %v553 = vpop.xlane.xlu0 %552
    %v554 = vsel %vm550, %v423, 0.0
    %555 = vadd.xlane.f32.xlu0 %v554
    %v556 = vpop.xlane.xlu0 %555
    %v557 = vsel %vm550, %v424, 0.0
    %558 = vadd.xlane.f32.xlu0 %v557
    %v559 = vpop.xlane.xlu0 %558
    %v560 = vsel %vm550, %v425, 0.0
    %561 = vadd.xlane.f32.xlu0 %v560
    %v562 = vpop.xlane.xlu0 %561
    %v563 = vsel %vm550, %v426, 0.0
    %564 = vadd.xlane.f32.xlu0 %v563
    %v565 = vpop.xlane.xlu0 %564
    %v566 = vsel %vm550, %v427, 0.0
    %567 = vadd.xlane.f32.xlu0 %v566
    %v568 = vpop.xlane.xlu0 %567
    %v569 = vsel %vm550, %v428, 0.0
    %570 = vadd.xlane.f32.xlu0 %v569
    %v571 = vpop.xlane.xlu0 %570
    %v572 = vsel %vm550, %v429, 0.0
    %573 = vadd.xlane.f32.xlu0 %v572
    %v574 = vpop.xlane.xlu0 %573
    %v575 = vsel %vm550, %v430, 0.0
    %576 = vadd.xlane.f32.xlu0 %v575
    %v577 = vpop.xlane.xlu0 %576
    %v578 = vsel %vm550, %v431, 0.0
    %579 = vadd.xlane.f32.xlu0 %v578
    %v580 = vpop.xlane.xlu0 %579
    %v581 = vsel %vm550, %v432, 0.0
    %582 = vadd.xlane.f32.xlu0 %v581
    %v583 = vpop.xlane.xlu0 %582
    %v584 = vsel %vm550, %v433, 0.0
    %585 = vadd.xlane.f32.xlu0 %v584
    %v586 = vpop.xlane.xlu0 %585
    %v587 = vsel %vm550, %v434, 0.0
    %588 = vadd.xlane.f32.xlu0 %v587
    %v589 = vpop.xlane.xlu0 %588
    %v590 = vsel %vm550, %v435, 0.0
    %591 = vadd.xlane.f32.xlu0 %v590
    %v592 = vpop.xlane.xlu0 %591
    %v593 = vsel %vm550, %v436, 0.0
    %594 = vadd.xlane.f32.xlu0 %v593
    %v595 = vpop.xlane.xlu0 %594
    %v596 = vsel %vm550, %v437, 0.0
    %597 = vadd.xlane.f32.xlu0 %v596
    %v598 = vpop.xlane.xlu0 %597
    %v599 = vsel %vm550, %v438, 0.0
    %600 = vadd.xlane.f32.xlu0 %v599
    %v601 = vpop.xlane.xlu0 %600
    %v602 = vsel %vm550, %v439, 0.0
    %603 = vadd.xlane.f32.xlu0 %v602
    %v604 = vpop.xlane.xlu0 %603
    %v605 = vsel %vm550, %v440, 0.0
    %606 = vadd.xlane.f32.xlu0 %v605
    %v607 = vpop.xlane.xlu0 %606
    %v608 = vsel %vm550, %v441, 0.0
    %609 = vadd.xlane.f32.xlu0 %v608
    %v610 = vpop.xlane.xlu0 %609
    %v611 = vsel %vm550, %v442, 0.0
    %612 = vadd.xlane.f32.xlu0 %v611
    %v613 = vpop.xlane.xlu0 %612
    %v614 = vsel %vm550, %v443, 0.0
    %615 = vadd.xlane.f32.xlu0 %v614
    %v616 = vpop.xlane.xlu0 %615
    %v617 = vsel %vm550, %v444, 0.0
    %618 = vadd.xlane.f32.xlu0 %v617
    %v619 = vpop.xlane.xlu0 %618
    %v620 = vsel %vm550, %v445, 0.0
    %621 = vadd.xlane.f32.xlu0 %v620
    %v622 = vpop.xlane.xlu0 %621
    %v623 = vsel %vm550, %v446, 0.0
    %624 = vadd.xlane.f32.xlu0 %v623
    %v625 = vpop.xlane.xlu0 %624
    %v626 = vsel %vm550, %v447, 0.0
    %627 = vadd.xlane.f32.xlu0 %v626
    %v628 = vpop.xlane.xlu0 %627
    %v629 = vsel %vm550, %v448, 0.0
    %630 = vadd.xlane.f32.xlu0 %v629
    %v631 = vpop.xlane.xlu0 %630
    %v632 = vsel %vm550, %v449, 0.0
    %633 = vadd.xlane.f32.xlu0 %v632
    %v634 = vpop.xlane.xlu0 %633
    %v635 = vsel %vm550, %v450, 0.0
    %636 = vadd.xlane.f32.xlu0 %v635
    %v637 = vpop.xlane.xlu0 %636
    %v638 = vsel %vm550, %v451, 0.0
    %639 = vadd.xlane.f32.xlu0 %v638
    %v640 = vpop.xlane.xlu0 %639
    %v641 = vsel %vm550, %v452, 0.0
    %642 = vadd.xlane.f32.xlu0 %v641
    %v643 = vpop.xlane.xlu0 %642
    %v644 = vsel %vm550, %v453, 0.0
    %645 = vadd.xlane.f32.xlu0 %v644
    %v646 = vpop.xlane.xlu0 %645
    %v647 = vsel %vm550, %v454, 0.0
    %648 = vadd.xlane.f32.xlu0 %v647
    %v649 = vpop.xlane.xlu0 %648
    %v650 = vsel %vm550, %v455, 0.0
    %651 = vadd.xlane.f32.xlu0 %v650
    %v652 = vpop.xlane.xlu0 %651
    %v653 = vsel %vm550, %v456, 0.0
    %654 = vadd.xlane.f32.xlu0 %v653
    %v655 = vpop.xlane.xlu0 %654
    %v656 = vsel %vm550, %v457, 0.0
    %657 = vadd.xlane.f32.xlu0 %v656
    %v658 = vpop.xlane.xlu0 %657
    %v659 = vsel %vm550, %v458, 0.0
    %660 = vadd.xlane.f32.xlu0 %v659
    %v661 = vpop.xlane.xlu0 %660
    %v662 = vsel %vm550, %v459, 0.0
    %663 = vadd.xlane.f32.xlu0 %v662
    %v664 = vpop.xlane.xlu0 %663
    %v665 = vsel %vm550, %v460, 0.0
    %666 = vadd.xlane.f32.xlu0 %v665
    %v667 = vpop.xlane.xlu0 %666
    %v668 = vsel %vm550, %v461, 0.0
    %669 = vadd.xlane.f32.xlu0 %v668
    %v670 = vpop.xlane.xlu0 %669
    %v671 = vsel %vm550, %v462, 0.0
    %672 = vadd.xlane.f32.xlu0 %v671
    %v673 = vpop.xlane.xlu0 %672
    %v674 = vsel %vm550, %v463, 0.0
    %675 = vadd.xlane.f32.xlu0 %v674
    %v676 = vpop.xlane.xlu0 %675
    %v677 = vsel %vm550, %v464, 0.0
    %678 = vadd.xlane.f32.xlu0 %v677
    %v679 = vpop.xlane.xlu0 %678
    %v680 = vsel %vm550, %v465, 0.0
    %681 = vadd.xlane.f32.xlu0 %v680
    %v682 = vpop.xlane.xlu0 %681
    %v683 = vsel %vm550, %v466, 0.0
    %684 = vadd.xlane.f32.xlu0 %v683
    %v685 = vpop.xlane.xlu0 %684
    %v686 = vsel %vm550, %v467, 0.0
    %687 = vadd.xlane.f32.xlu0 %v686
    %v688 = vpop.xlane.xlu0 %687
    %v689 = vsel %vm550, %v468, 0.0
    %690 = vadd.xlane.f32.xlu0 %v689
    %v691 = vpop.xlane.xlu0 %690
    %v692 = vsel %vm550, %v469, 0.0
    %693 = vadd.xlane.f32.xlu0 %v692
    %v694 = vpop.xlane.xlu0 %693
    %v695 = vsel %vm550, %v470, 0.0
    %696 = vadd.xlane.f32.xlu0 %v695
    %v697 = vpop.xlane.xlu0 %696
    %v698 = vsel %vm550, %v471, 0.0
    %699 = vadd.xlane.f32.xlu0 %v698
    %v700 = vpop.xlane.xlu0 %699
    %v701 = vsel %vm550, %v472, 0.0
    %702 = vadd.xlane.f32.xlu0 %v701
    %v703 = vpop.xlane.xlu0 %702
    %v704 = vsel %vm550, %v473, 0.0
    %705 = vadd.xlane.f32.xlu0 %v704
    %v706 = vpop.xlane.xlu0 %705
    %v707 = vsel %vm550, %v474, 0.0
    %708 = vadd.xlane.f32.xlu0 %v707
    %v709 = vpop.xlane.xlu0 %708
    %v710 = vsel %vm550, %v475, 0.0
    %711 = vadd.xlane.f32.xlu0 %v710
    %v712 = vpop.xlane.xlu0 %711
    %v713 = vsel %vm550, %v476, 0.0
    %714 = vadd.xlane.f32.xlu0 %v713
    %v715 = vpop.xlane.xlu0 %714
    %v716 = vsel %vm550, %v477, 0.0
    %717 = vadd.xlane.f32.xlu0 %v716
    %v718 = vpop.xlane.xlu0 %717
    %v719 = vsel %vm550, %v478, 0.0
    %720 = vadd.xlane.f32.xlu0 %v719
    %v721 = vpop.xlane.xlu0 %720
    %v722 = vsel %vm550, %v479, 0.0
    %723 = vadd.xlane.f32.xlu0 %v722
    %v724 = vpop.xlane.xlu0 %723
    %v725 = vsel %vm550, %v480, 0.0
    %726 = vadd.xlane.f32.xlu0 %v725
    %v727 = vpop.xlane.xlu0 %726
    %v728 = vsel %vm550, %v481, 0.0
    %729 = vadd.xlane.f32.xlu0 %v728
    %v730 = vpop.xlane.xlu0 %729
    %v731 = vsel %vm550, %v482, 0.0
    %732 = vadd.xlane.f32.xlu0 %v731
    %v733 = vpop.xlane.xlu0 %732
    %v734 = vsel %vm550, %v483, 0.0
    %735 = vadd.xlane.f32.xlu0 %v734
    %v736 = vpop.xlane.xlu0 %735
    %v737 = vsel %vm550, %v484, 0.0
    %738 = vadd.xlane.f32.xlu0 %v737
    %v739 = vpop.xlane.xlu0 %738
    %v740 = vsel %vm550, %v485, 0.0
    %741 = vadd.xlane.f32.xlu0 %v740
    %v742 = vpop.xlane.xlu0 %741
    %v743 = vsel %vm550, %v486, 0.0
    %744 = vadd.xlane.f32.xlu0 %v743
    %v745 = vpop.xlane.xlu0 %744
    %v746 = vsel %vm550, %v487, 0.0
    %747 = vadd.xlane.f32.xlu0 %v746
    %v748 = vpop.xlane.xlu0 %747
    %v749 = vsel %vm550, %v488, 0.0
    %750 = vadd.xlane.f32.xlu0 %v749
    %v751 = vpop.xlane.xlu0 %750
    %v752 = vsel %vm550, %v489, 0.0
    %753 = vadd.xlane.f32.xlu0 %v752
    %v754 = vpop.xlane.xlu0 %753
    %v755 = vsel %vm550, %v490, 0.0
    %756 = vadd.xlane.f32.xlu0 %v755
    %v757 = vpop.xlane.xlu0 %756
    %v758 = vsel %vm550, %v491, 0.0
    %759 = vadd.xlane.f32.xlu0 %v758
    %v760 = vpop.xlane.xlu0 %759
    %v761 = vsel %vm550, %v492, 0.0
    %762 = vadd.xlane.f32.xlu0 %v761
    %v763 = vpop.xlane.xlu0 %762
    %v764 = vsel %vm550, %v493, 0.0
    %765 = vadd.xlane.f32.xlu0 %v764
    %v766 = vpop.xlane.xlu0 %765
    %v767 = vsel %vm550, %v494, 0.0
    %768 = vadd.xlane.f32.xlu0 %v767
    %v769 = vpop.xlane.xlu0 %768
    %v770 = vsel %vm550, %v495, 0.0
    %771 = vadd.xlane.f32.xlu0 %v770
    %v772 = vpop.xlane.xlu0 %771
    %v773 = vsel %vm550, %v496, 0.0
    %774 = vadd.xlane.f32.xlu0 %v773
    %v775 = vpop.xlane.xlu0 %774
    %v776 = vsel %vm550, %v497, 0.0
    %777 = vadd.xlane.f32.xlu0 %v776
    %v778 = vpop.xlane.xlu0 %777
    %v779 = vsel %vm550, %v498, 0.0
    %780 = vadd.xlane.f32.xlu0 %v779
    %v781 = vpop.xlane.xlu0 %780
    %v782 = vsel %vm550, %v499, 0.0
    %783 = vadd.xlane.f32.xlu0 %v782
    %v784 = vpop.xlane.xlu0 %783
    %v785 = vsel %vm550, %v500, 0.0
    %786 = vadd.xlane.f32.xlu0 %v785
    %v787 = vpop.xlane.xlu0 %786
    %v788 = vsel %vm550, %v501, 0.0
    %789 = vadd.xlane.f32.xlu0 %v788
    %v790 = vpop.xlane.xlu0 %789
    %v791 = vsel %vm550, %v502, 0.0
    %792 = vadd.xlane.f32.xlu0 %v791
    %v793 = vpop.xlane.xlu0 %792
    %v794 = vsel %vm550, %v503, 0.0
    %795 = vadd.xlane.f32.xlu0 %v794
    %v796 = vpop.xlane.xlu0 %795
    %v797 = vsel %vm550, %v504, 0.0
    %798 = vadd.xlane.f32.xlu0 %v797
    %v799 = vpop.xlane.xlu0 %798
    %v800 = vsel %vm550, %v505, 0.0
    %801 = vadd.xlane.f32.xlu0 %v800
    %v802 = vpop.xlane.xlu0 %801
    %v803 = vsel %vm550, %v506, 0.0
    %804 = vadd.xlane.f32.xlu0 %v803
    %v805 = vpop.xlane.xlu0 %804
    %v806 = vsel %vm550, %v507, 0.0
    %807 = vadd.xlane.f32.xlu0 %v806
    %v808 = vpop.xlane.xlu0 %807
    %v809 = vsel %vm550, %v508, 0.0
    %810 = vadd.xlane.f32.xlu0 %v809
    %v811 = vpop.xlane.xlu0 %810
    %v812 = vsel %vm550, %v509, 0.0
    %813 = vadd.xlane.f32.xlu0 %v812
    %v814 = vpop.xlane.xlu0 %813
    %v815 = vsel %vm550, %v510, 0.0
    %816 = vadd.xlane.f32.xlu0 %v815
    %v817 = vpop.xlane.xlu0 %816
    %v818 = vsel %vm550, %v511, 0.0
    %819 = vadd.xlane.f32.xlu0 %v818
    %v820 = vpop.xlane.xlu0 %819
    %v821 = vsel %vm550, %v512, 0.0
    %822 = vadd.xlane.f32.xlu0 %v821
    %v823 = vpop.xlane.xlu0 %822
    %v824 = vsel %vm550, %v513, 0.0
    %825 = vadd.xlane.f32.xlu0 %v824
    %v826 = vpop.xlane.xlu0 %825
    %v827 = vsel %vm550, %v514, 0.0
    %828 = vadd.xlane.f32.xlu0 %v827
    %v829 = vpop.xlane.xlu0 %828
    %v830 = vsel %vm550, %v515, 0.0
    %831 = vadd.xlane.f32.xlu0 %v830
    %v832 = vpop.xlane.xlu0 %831
    %v833 = vsel %vm550, %v516, 0.0
    %834 = vadd.xlane.f32.xlu0 %v833
    %v835 = vpop.xlane.xlu0 %834
    %v836 = vsel %vm550, %v517, 0.0
    %837 = vadd.xlane.f32.xlu0 %v836
    %v838 = vpop.xlane.xlu0 %837
    %v839 = vsel %vm550, %v518, 0.0
    %840 = vadd.xlane.f32.xlu0 %v839
    %v841 = vpop.xlane.xlu0 %840
    %v842 = vsel %vm550, %v519, 0.0
    %843 = vadd.xlane.f32.xlu0 %v842
    %v844 = vpop.xlane.xlu0 %843
    %v845 = vsel %vm550, %v520, 0.0
    %846 = vadd.xlane.f32.xlu0 %v845
    %v847 = vpop.xlane.xlu0 %846
    %v848 = vsel %vm550, %v521, 0.0
    %849 = vadd.xlane.f32.xlu0 %v848
    %v850 = vpop.xlane.xlu0 %849
    %v851 = vsel %vm550, %v522, 0.0
    %852 = vadd.xlane.f32.xlu0 %v851
    %v853 = vpop.xlane.xlu0 %852
    %v854 = vsel %vm550, %v523, 0.0
    %855 = vadd.xlane.f32.xlu0 %v854
    %v856 = vpop.xlane.xlu0 %855
    %v857 = vsel %vm550, %v524, 0.0
    %858 = vadd.xlane.f32.xlu0 %v857
    %v859 = vpop.xlane.xlu0 %858
    %v860 = vsel %vm550, %v525, 0.0
    %861 = vadd.xlane.f32.xlu0 %v860
    %v862 = vpop.xlane.xlu0 %861
    %v863 = vsel %vm550, %v526, 0.0
    %864 = vadd.xlane.f32.xlu0 %v863
    %v865 = vpop.xlane.xlu0 %864
    %v866 = vsel %vm550, %v527, 0.0
    %867 = vadd.xlane.f32.xlu0 %v866
    %v868 = vpop.xlane.xlu0 %867
    %v869 = vsel %vm550, %v528, 0.0
    %870 = vadd.xlane.f32.xlu0 %v869
    %v871 = vpop.xlane.xlu0 %870
    %v872 = vsel %vm550, %v529, 0.0
    %873 = vadd.xlane.f32.xlu0 %v872
    %v874 = vpop.xlane.xlu0 %873
    %v875 = vsel %vm550, %v530, 0.0
    %876 = vadd.xlane.f32.xlu0 %v875
    %v877 = vpop.xlane.xlu0 %876
    %v878 = vsel %vm550, %v531, 0.0
    %879 = vadd.xlane.f32.xlu0 %v878
    %v880 = vpop.xlane.xlu0 %879
    %v881 = vsel %vm550, %v532, 0.0
    %882 = vadd.xlane.f32.xlu0 %v881
    %v883 = vpop.xlane.xlu0 %882
    %v884 = vsel %vm550, %v533, 0.0
    %885 = vadd.xlane.f32.xlu0 %v884
    %v886 = vpop.xlane.xlu0 %885
    %v887 = vsel %vm550, %v534, 0.0
    %888 = vadd.xlane.f32.xlu0 %v887
    %v889 = vpop.xlane.xlu0 %888
    %v890 = vsel %vm550, %v535, 0.0
    %891 = vadd.xlane.f32.xlu0 %v890
    %v892 = vpop.xlane.xlu0 %891
    %v893 = vsel %vm550, %v536, 0.0
    %894 = vadd.xlane.f32.xlu0 %v893
    %v895 = vpop.xlane.xlu0 %894
    %v896 = vsel %vm550, %v537, 0.0
    %897 = vadd.xlane.f32.xlu0 %v896
    %v898 = vpop.xlane.xlu0 %897
    %v899 = vsel %vm550, %v538, 0.0
    %900 = vadd.xlane.f32.xlu0 %v899
    %v901 = vpop.xlane.xlu0 %900
    %v902 = vsel %vm550, %v539, 0.0
    %903 = vadd.xlane.f32.xlu0 %v902
    %v904 = vpop.xlane.xlu0 %903
    %v905 = vsel %vm550, %v540, 0.0
    %906 = vadd.xlane.f32.xlu0 %v905
    %v907 = vpop.xlane.xlu0 %906
    %v908 = vsel %vm550, %v541, 0.0
    %909 = vadd.xlane.f32.xlu0 %v908
    %v910 = vpop.xlane.xlu0 %909
    %v911 = vsel %vm550, %v542, 0.0
    %912 = vadd.xlane.f32.xlu0 %v911
    %v913 = vpop.xlane.xlu0 %912
    %v914 = vsel %vm550, %v543, 0.0
    %915 = vadd.xlane.f32.xlu0 %v914
    %v916 = vpop.xlane.xlu0 %915
    %v917 = vsel %vm550, %v544, 0.0
    %918 = vadd.xlane.f32.xlu0 %v917
    %v919 = vpop.xlane.xlu0 %918
    %v920 = vsel %vm550, %v545, 0.0
    %921 = vadd.xlane.f32.xlu0 %v920
    %v922 = vpop.xlane.xlu0 %921
    %v923 = vsel %vm550, %v546, 0.0
    %924 = vadd.xlane.f32.xlu0 %v923
    %v925 = vpop.xlane.xlu0 %924
    %v926 = vsel %vm550, %v547, 0.0
    %927 = vadd.xlane.f32.xlu0 %v926
    %v928 = vpop.xlane.xlu0 %927
    %v929 = vsel %vm550, %v548, 0.0
    %930 = vadd.xlane.f32.xlu0 %v929
    %v931 = vpop.xlane.xlu0 %930
    %v932 = vsel %vm550, %v549, 0.0
    %933 = vadd.xlane.f32.xlu0 %v932
    %v934 = vpop.xlane.xlu0 %933
    %v935 = vsub.f32 0.0, %v553
    %v936 = vsub.f32 0.0, %v556
    %v937 = vsub.f32 0.0, %v559
    %v938 = vsub.f32 0.0, %v562
    %v939 = vsub.f32 0.0, %v565
    %v940 = vsub.f32 0.0, %v568
    %v941 = vsub.f32 0.0, %v571
    %v942 = vsub.f32 0.0, %v574
    %v943 = vsub.f32 0.0, %v577
    %v944 = vsub.f32 0.0, %v580
    %v945 = vsub.f32 0.0, %v583
    %v946 = vsub.f32 0.0, %v586
    %v947 = vsub.f32 0.0, %v589
    %v948 = vsub.f32 0.0, %v592
    %v949 = vsub.f32 0.0, %v595
    %v950 = vsub.f32 0.0, %v598
    %v951 = vsub.f32 0.0, %v601
    %v952 = vsub.f32 0.0, %v604
    %v953 = vsub.f32 0.0, %v607
    %v954 = vsub.f32 0.0, %v610
    %v955 = vsub.f32 0.0, %v613
    %v956 = vsub.f32 0.0, %v616
    %v957 = vsub.f32 0.0, %v619
    %v958 = vsub.f32 0.0, %v622
    %v959 = vsub.f32 0.0, %v625
    %v960 = vsub.f32 0.0, %v628
    %v961 = vsub.f32 0.0, %v631
    %v962 = vsub.f32 0.0, %v634
    %v963 = vsub.f32 0.0, %v637
    %v964 = vsub.f32 0.0, %v640
    %v965 = vsub.f32 0.0, %v643
    %v966 = vsub.f32 0.0, %v646
    %v967 = vsub.f32 0.0, %v649
    %v968 = vsub.f32 0.0, %v652
    %v969 = vsub.f32 0.0, %v655
    %v970 = vsub.f32 0.0, %v658
    %v971 = vsub.f32 0.0, %v661
    %v972 = vsub.f32 0.0, %v664
    %v973 = vsub.f32 0.0, %v667
    %v974 = vsub.f32 0.0, %v670
    %v975 = vsub.f32 0.0, %v673
    %v976 = vsub.f32 0.0, %v676
    %v977 = vsub.f32 0.0, %v679
    %v978 = vsub.f32 0.0, %v682
    %v979 = vsub.f32 0.0, %v685
    %v980 = vsub.f32 0.0, %v688
    %v981 = vsub.f32 0.0, %v691
    %v982 = vsub.f32 0.0, %v694
    %v983 = vsub.f32 0.0, %v697
    %v984 = vsub.f32 0.0, %v700
    %v985 = vsub.f32 0.0, %v703
    %v986 = vsub.f32 0.0, %v706
    %v987 = vsub.f32 0.0, %v709
    %v988 = vsub.f32 0.0, %v712
    %v989 = vsub.f32 0.0, %v715
    %v990 = vsub.f32 0.0, %v718
    %v991 = vsub.f32 0.0, %v721
    %v992 = vsub.f32 0.0, %v724
    %v993 = vsub.f32 0.0, %v727
    %v994 = vsub.f32 0.0, %v730
    %v995 = vsub.f32 0.0, %v733
    %v996 = vsub.f32 0.0, %v736
    %v997 = vsub.f32 0.0, %v739
    %v998 = vsub.f32 0.0, %v742
    %v999 = vsub.f32 0.0, %v745
    %v1000 = vsub.f32 0.0, %v748
    %v1001 = vsub.f32 0.0, %v751
    %v1002 = vsub.f32 0.0, %v754
    %v1003 = vsub.f32 0.0, %v757
    %v1004 = vsub.f32 0.0, %v760
    %v1005 = vsub.f32 0.0, %v763
    %v1006 = vsub.f32 0.0, %v766
    %v1007 = vsub.f32 0.0, %v769
    %v1008 = vsub.f32 0.0, %v772
    %v1009 = vsub.f32 0.0, %v775
    %v1010 = vsub.f32 0.0, %v778
    %v1011 = vsub.f32 0.0, %v781
    %v1012 = vsub.f32 0.0, %v784
    %v1013 = vsub.f32 0.0, %v787
    %v1014 = vsub.f32 0.0, %v790
    %v1015 = vsub.f32 0.0, %v793
    %v1016 = vsub.f32 0.0, %v796
    %v1017 = vsub.f32 0.0, %v799
    %v1018 = vsub.f32 0.0, %v802
    %v1019 = vsub.f32 0.0, %v805
    %v1020 = vsub.f32 0.0, %v808
    %v1021 = vsub.f32 0.0, %v811
    %v1022 = vsub.f32 0.0, %v814
    %v1023 = vsub.f32 0.0, %v817
    %v1024 = vsub.f32 0.0, %v820
    %v1025 = vsub.f32 0.0, %v823
    %v1026 = vsub.f32 0.0, %v826
    %v1027 = vsub.f32 0.0, %v829
    %v1028 = vsub.f32 0.0, %v832
    %v1029 = vsub.f32 0.0, %v835
    %v1030 = vsub.f32 0.0, %v838
    %v1031 = vsub.f32 0.0, %v841
    %v1032 = vsub.f32 0.0, %v844
    %v1033 = vsub.f32 0.0, %v847
    %v1034 = vsub.f32 0.0, %v850
    %v1035 = vsub.f32 0.0, %v853
    %v1036 = vsub.f32 0.0, %v856
    %v1037 = vsub.f32 0.0, %v859
    %v1038 = vsub.f32 0.0, %v862
    %v1039 = vsub.f32 0.0, %v865
    %v1040 = vsub.f32 0.0, %v868
    %v1041 = vsub.f32 0.0, %v871
    %v1042 = vsub.f32 0.0, %v874
    %v1043 = vsub.f32 0.0, %v877
    %v1044 = vsub.f32 0.0, %v880
    %v1045 = vsub.f32 0.0, %v883
    %v1046 = vsub.f32 0.0, %v886
    %v1047 = vsub.f32 0.0, %v889
    %v1048 = vsub.f32 0.0, %v892
    %v1049 = vsub.f32 0.0, %v895
    %v1050 = vsub.f32 0.0, %v898
    %v1051 = vsub.f32 0.0, %v901
    %v1052 = vsub.f32 0.0, %v904
    %v1053 = vsub.f32 0.0, %v907
    %v1054 = vsub.f32 0.0, %v910
    %v1055 = vsub.f32 0.0, %v913
    %v1056 = vsub.f32 0.0, %v916
    %v1057 = vsub.f32 0.0, %v919
    %v1058 = vsub.f32 0.0, %v922
    %v1059 = vsub.f32 0.0, %v925
    %v1060 = vsub.f32 0.0, %v928
    %v1061 = vsub.f32 0.0, %v931
    %v1062 = vsub.f32 0.0, %v934
    %v1191 = vlaneseq
    %v1192 = vand.u32 %v1191, 127
    %v1193 = vperm.slane %v935, %v1192
    %v1194 = vadd.s32 %v1192, 4294967288
    %v1195 = vperm.slane %v936, %v1194
    %vm1196 = vcmask 130112
    %v1197 = vsel %vm1196, %v1195, %v1193
    %v1198 = vadd.s32 %v1192, 4294967280
    %v1199 = vperm.slane %v937, %v1198
    %vm1200 = vcmask 195712
    %v1201 = vsel %vm1200, %v1199, %v1197
    %v1202 = vadd.s32 %v1192, 4294967272
    %v1203 = vperm.slane %v938, %v1202
    %vm1204 = vcmask 261312
    %v1205 = vsel %vm1204, %v1203, %v1201
    %v1206 = vadd.s32 %v1192, 4294967264
    %v1207 = vperm.slane %v939, %v1206
    %vm1208 = vcmask 326912
    %v1209 = vsel %vm1208, %v1207, %v1205
    %v1210 = vadd.s32 %v1192, 4294967256
    %v1211 = vperm.slane %v940, %v1210
    %vm1212 = vcmask 392512
    %v1213 = vsel %vm1212, %v1211, %v1209
    %v1214 = vadd.s32 %v1192, 4294967248
    %v1215 = vperm.slane %v941, %v1214
    %vm1216 = vcmask 458112
    %v1217 = vsel %vm1216, %v1215, %v1213
    %v1218 = vadd.s32 %v1192, 4294967240
    %v1219 = vperm.slane %v942, %v1218
    %vm1220 = vcmask 523712
    %v1221 = vsel %vm1220, %v1219, %v1217
    %v1222 = vadd.s32 %v1192, 4294967232
    %v1223 = vperm.slane %v943, %v1222
    %vm1224 = vcmask 589312
    %v1225 = vsel %vm1224, %v1223, %v1221
    %v1226 = vadd.s32 %v1192, 4294967224
    %v1227 = vperm.slane %v944, %v1226
    %vm1228 = vcmask 654912
    %v1229 = vsel %vm1228, %v1227, %v1225
    %v1230 = vadd.s32 %v1192, 4294967216
    %v1231 = vperm.slane %v945, %v1230
    %vm1232 = vcmask 720512
    %v1233 = vsel %vm1232, %v1231, %v1229
    %v1234 = vadd.s32 %v1192, 4294967208
    %v1235 = vperm.slane %v946, %v1234
    %vm1236 = vcmask 786112
    %v1237 = vsel %vm1236, %v1235, %v1233
    %v1238 = vadd.s32 %v1192, 4294967200
    %v1239 = vperm.slane %v947, %v1238
    %vm1240 = vcmask 851712
    %v1241 = vsel %vm1240, %v1239, %v1237
    %v1242 = vadd.s32 %v1192, 4294967192
    %v1243 = vperm.slane %v948, %v1242
    %vm1244 = vcmask 917312
    %v1245 = vsel %vm1244, %v1243, %v1241
    %v1246 = vadd.s32 %v1192, 4294967184
    %v1247 = vperm.slane %v949, %v1246
    %vm1248 = vcmask 982912
    %v1249 = vsel %vm1248, %v1247, %v1245
    %v1250 = vadd.s32 %v1192, 4294967176
    %v1251 = vperm.slane %v950, %v1250
    %vm1252 = vcmask 1048512
    %v1253 = vsel %vm1252, %v1251, %v1249
    %v1254 = vperm.slane %v951, %v1192
    %v1255 = vperm.slane %v952, %v1194
    %v1256 = vsel %vm1196, %v1255, %v1254
    %v1257 = vperm.slane %v953, %v1198
    %v1258 = vsel %vm1200, %v1257, %v1256
    %v1259 = vperm.slane %v954, %v1202
    %v1260 = vsel %vm1204, %v1259, %v1258
    %v1261 = vperm.slane %v955, %v1206
    %v1262 = vsel %vm1208, %v1261, %v1260
    %v1263 = vperm.slane %v956, %v1210
    %v1264 = vsel %vm1212, %v1263, %v1262
    %v1265 = vperm.slane %v957, %v1214
    %v1266 = vsel %vm1216, %v1265, %v1264
    %v1267 = vperm.slane %v958, %v1218
    %v1268 = vsel %vm1220, %v1267, %v1266
    %v1269 = vperm.slane %v959, %v1222
    %v1270 = vsel %vm1224, %v1269, %v1268
    %v1271 = vperm.slane %v960, %v1226
    %v1272 = vsel %vm1228, %v1271, %v1270
    %v1273 = vperm.slane %v961, %v1230
    %v1274 = vsel %vm1232, %v1273, %v1272
    %v1275 = vperm.slane %v962, %v1234
    %v1276 = vsel %vm1236, %v1275, %v1274
    %v1277 = vperm.slane %v963, %v1238
    %v1278 = vsel %vm1240, %v1277, %v1276
    %v1279 = vperm.slane %v964, %v1242
    %v1280 = vsel %vm1244, %v1279, %v1278
    %v1281 = vperm.slane %v965, %v1246
    %v1282 = vsel %vm1248, %v1281, %v1280
    %v1283 = vperm.slane %v966, %v1250
    %v1284 = vsel %vm1252, %v1283, %v1282
    %v1285 = vperm.slane %v967, %v1192
    %v1286 = vperm.slane %v968, %v1194
    %v1287 = vsel %vm1196, %v1286, %v1285
    %v1288 = vperm.slane %v969, %v1198
    %v1289 = vsel %vm1200, %v1288, %v1287
    %v1290 = vperm.slane %v970, %v1202
    %v1291 = vsel %vm1204, %v1290, %v1289
    %v1292 = vperm.slane %v971, %v1206
    %v1293 = vsel %vm1208, %v1292, %v1291
    %v1294 = vperm.slane %v972, %v1210
    %v1295 = vsel %vm1212, %v1294, %v1293
    %v1296 = vperm.slane %v973, %v1214
    %v1297 = vsel %vm1216, %v1296, %v1295
    %v1298 = vperm.slane %v974, %v1218
    %v1299 = vsel %vm1220, %v1298, %v1297
    %v1300 = vperm.slane %v975, %v1222
    %v1301 = vsel %vm1224, %v1300, %v1299
    %v1302 = vperm.slane %v976, %v1226
    %v1303 = vsel %vm1228, %v1302, %v1301
    %v1304 = vperm.slane %v977, %v1230
    %v1305 = vsel %vm1232, %v1304, %v1303
    %v1306 = vperm.slane %v978, %v1234
    %v1307 = vsel %vm1236, %v1306, %v1305
    %v1308 = vperm.slane %v979, %v1238
    %v1309 = vsel %vm1240, %v1308, %v1307
    %v1310 = vperm.slane %v980, %v1242
    %v1311 = vsel %vm1244, %v1310, %v1309
    %v1312 = vperm.slane %v981, %v1246
    %v1313 = vsel %vm1248, %v1312, %v1311
    %v1314 = vperm.slane %v982, %v1250
    %v1315 = vsel %vm1252, %v1314, %v1313
    %v1316 = vperm.slane %v983, %v1192
    %v1317 = vperm.slane %v984, %v1194
    %v1318 = vsel %vm1196, %v1317, %v1316
    %v1319 = vperm.slane %v985, %v1198
    %v1320 = vsel %vm1200, %v1319, %v1318
    %v1321 = vperm.slane %v986, %v1202
    %v1322 = vsel %vm1204, %v1321, %v1320
    %v1323 = vperm.slane %v987, %v1206
    %v1324 = vsel %vm1208, %v1323, %v1322
    %v1325 = vperm.slane %v988, %v1210
    %v1326 = vsel %vm1212, %v1325, %v1324
    %v1327 = vperm.slane %v989, %v1214
    %v1328 = vsel %vm1216, %v1327, %v1326
    %v1329 = vperm.slane %v990, %v1218
    %v1330 = vsel %vm1220, %v1329, %v1328
    %v1331 = vperm.slane %v991, %v1222
    %v1332 = vsel %vm1224, %v1331, %v1330
    %v1333 = vperm.slane %v992, %v1226
    %v1334 = vsel %vm1228, %v1333, %v1332
    %v1335 = vperm.slane %v993, %v1230
    %v1336 = vsel %vm1232, %v1335, %v1334
    %v1337 = vperm.slane %v994, %v1234
    %v1338 = vsel %vm1236, %v1337, %v1336
    %v1339 = vperm.slane %v995, %v1238
    %v1340 = vsel %vm1240, %v1339, %v1338
    %v1341 = vperm.slane %v996, %v1242
    %v1342 = vsel %vm1244, %v1341, %v1340
    %v1343 = vperm.slane %v997, %v1246
    %v1344 = vsel %vm1248, %v1343, %v1342
    %v1345 = vperm.slane %v998, %v1250
    %v1346 = vsel %vm1252, %v1345, %v1344
    %v1347 = vperm.slane %v999, %v1192
    %v1348 = vperm.slane %v1000, %v1194
    %v1349 = vsel %vm1196, %v1348, %v1347
    %v1350 = vperm.slane %v1001, %v1198
    %v1351 = vsel %vm1200, %v1350, %v1349
    %v1352 = vperm.slane %v1002, %v1202
    %v1353 = vsel %vm1204, %v1352, %v1351
    %v1354 = vperm.slane %v1003, %v1206
    %v1355 = vsel %vm1208, %v1354, %v1353
    %v1356 = vperm.slane %v1004, %v1210
    %v1357 = vsel %vm1212, %v1356, %v1355
    %v1358 = vperm.slane %v1005, %v1214
    %v1359 = vsel %vm1216, %v1358, %v1357
    %v1360 = vperm.slane %v1006, %v1218
    %v1361 = vsel %vm1220, %v1360, %v1359
    %v1362 = vperm.slane %v1007, %v1222
    %v1363 = vsel %vm1224, %v1362, %v1361
    %v1364 = vperm.slane %v1008, %v1226
    %v1365 = vsel %vm1228, %v1364, %v1363
    %v1366 = vperm.slane %v1009, %v1230
    %v1367 = vsel %vm1232, %v1366, %v1365
    %v1368 = vperm.slane %v1010, %v1234
    %v1369 = vsel %vm1236, %v1368, %v1367
    %v1370 = vperm.slane %v1011, %v1238
    %v1371 = vsel %vm1240, %v1370, %v1369
    %v1372 = vperm.slane %v1012, %v1242
    %v1373 = vsel %vm1244, %v1372, %v1371
    %v1374 = vperm.slane %v1013, %v1246
    %v1375 = vsel %vm1248, %v1374, %v1373
    %v1376 = vperm.slane %v1014, %v1250
    %v1377 = vsel %vm1252, %v1376, %v1375
    %v1378 = vperm.slane %v1015, %v1192
    %v1379 = vperm.slane %v1016, %v1194
    %v1380 = vsel %vm1196, %v1379, %v1378
    %v1381 = vperm.slane %v1017, %v1198
    %v1382 = vsel %vm1200, %v1381, %v1380
    %v1383 = vperm.slane %v1018, %v1202
    %v1384 = vsel %vm1204, %v1383, %v1382
    %v1385 = vperm.slane %v1019, %v1206
    %v1386 = vsel %vm1208, %v1385, %v1384
    %v1387 = vperm.slane %v1020, %v1210
    %v1388 = vsel %vm1212, %v1387, %v1386
    %v1389 = vperm.slane %v1021, %v1214
    %v1390 = vsel %vm1216, %v1389, %v1388
    %v1391 = vperm.slane %v1022, %v1218
    %v1392 = vsel %vm1220, %v1391, %v1390
    %v1393 = vperm.slane %v1023, %v1222
    %v1394 = vsel %vm1224, %v1393, %v1392
    %v1395 = vperm.slane %v1024, %v1226
    %v1396 = vsel %vm1228, %v1395, %v1394
    %v1397 = vperm.slane %v1025, %v1230
    %v1398 = vsel %vm1232, %v1397, %v1396
    %v1399 = vperm.slane %v1026, %v1234
    %v1400 = vsel %vm1236, %v1399, %v1398
    %v1401 = vperm.slane %v1027, %v1238
    %v1402 = vsel %vm1240, %v1401, %v1400
    %v1403 = vperm.slane %v1028, %v1242
    %v1404 = vsel %vm1244, %v1403, %v1402
    %v1405 = vperm.slane %v1029, %v1246
    %v1406 = vsel %vm1248, %v1405, %v1404
    %v1407 = vperm.slane %v1030, %v1250
    %v1408 = vsel %vm1252, %v1407, %v1406
    %v1409 = vperm.slane %v1031, %v1192
    %v1410 = vperm.slane %v1032, %v1194
    %v1411 = vsel %vm1196, %v1410, %v1409
    %v1412 = vperm.slane %v1033, %v1198
    %v1413 = vsel %vm1200, %v1412, %v1411
    %v1414 = vperm.slane %v1034, %v1202
    %v1415 = vsel %vm1204, %v1414, %v1413
    %v1416 = vperm.slane %v1035, %v1206
    %v1417 = vsel %vm1208, %v1416, %v1415
    %v1418 = vperm.slane %v1036, %v1210
    %v1419 = vsel %vm1212, %v1418, %v1417
    %v1420 = vperm.slane %v1037, %v1214
    %v1421 = vsel %vm1216, %v1420, %v1419
    %v1422 = vperm.slane %v1038, %v1218
    %v1423 = vsel %vm1220, %v1422, %v1421
    %v1424 = vperm.slane %v1039, %v1222
    %v1425 = vsel %vm1224, %v1424, %v1423
    %v1426 = vperm.slane %v1040, %v1226
    %v1427 = vsel %vm1228, %v1426, %v1425
    %v1428 = vperm.slane %v1041, %v1230
    %v1429 = vsel %vm1232, %v1428, %v1427
    %v1430 = vperm.slane %v1042, %v1234
    %v1431 = vsel %vm1236, %v1430, %v1429
    %v1432 = vperm.slane %v1043, %v1238
    %v1433 = vsel %vm1240, %v1432, %v1431
    %v1434 = vperm.slane %v1044, %v1242
    %v1435 = vsel %vm1244, %v1434, %v1433
    %v1436 = vperm.slane %v1045, %v1246
    %v1437 = vsel %vm1248, %v1436, %v1435
    %v1438 = vperm.slane %v1046, %v1250
    %v1439 = vsel %vm1252, %v1438, %v1437
    %v1440 = vperm.slane %v1047, %v1192
    %v1441 = vperm.slane %v1048, %v1194
    %v1442 = vsel %vm1196, %v1441, %v1440
    %v1443 = vperm.slane %v1049, %v1198
    %v1444 = vsel %vm1200, %v1443, %v1442
    %v1445 = vperm.slane %v1050, %v1202
    %v1446 = vsel %vm1204, %v1445, %v1444
    %v1447 = vperm.slane %v1051, %v1206
    %v1448 = vsel %vm1208, %v1447, %v1446
    %v1449 = vperm.slane %v1052, %v1210
    %v1450 = vsel %vm1212, %v1449, %v1448
    %v1451 = vperm.slane %v1053, %v1214
    %v1452 = vsel %vm1216, %v1451, %v1450
    %v1453 = vperm.slane %v1054, %v1218
    %v1454 = vsel %vm1220, %v1453, %v1452
    %v1455 = vperm.slane %v1055, %v1222
    %v1456 = vsel %vm1224, %v1455, %v1454
    %v1457 = vperm.slane %v1056, %v1226
    %v1458 = vsel %vm1228, %v1457, %v1456
    %v1459 = vperm.slane %v1057, %v1230
    %v1460 = vsel %vm1232, %v1459, %v1458
    %v1461 = vperm.slane %v1058, %v1234
    %v1462 = vsel %vm1236, %v1461, %v1460
    %v1463 = vperm.slane %v1059, %v1238
    %v1464 = vsel %vm1240, %v1463, %v1462
    %v1465 = vperm.slane %v1060, %v1242
    %v1466 = vsel %vm1244, %v1465, %v1464
    %v1467 = vperm.slane %v1061, %v1246
    %v1468 = vsel %vm1248, %v1467, %v1466
    %v1469 = vperm.slane %v1062, %v1250
    %v1470 = vsel %vm1252, %v1469, %v1468
    %vm1471 = vcmask 1041409
    %v1472 = vsel %vm1471, %v1284, %v1253
    %vm1473 = vcmask 1042434
    %v1474 = vsel %vm1473, %v1315, %v1472
    %vm1475 = vcmask 1043459
    %v1476 = vsel %vm1475, %v1346, %v1474
    %vm1477 = vcmask 1044484
    %v1478 = vsel %vm1477, %v1377, %v1476
    %vm1479 = vcmask 1045509
    %v1480 = vsel %vm1479, %v1408, %v1478
    %vm1481 = vcmask 1046534
    %v1482 = vsel %vm1481, %v1439, %v1480
    %vm1483 = vcmask 1047559
    %v1484 = vsel %vm1483, %v1470, %v1482
    %1486 = vst [vmem:[#allocation2] sm:$0xff] %v1484
    // Predicated region
    $region10: #{tpu_custom_call.1} parent=1 // pred_check
      _
    $region11: #{tpu_custom_call.1} parent=1 // pred_check_branch
      %1488 = sbr.rel (0) target = $region13
    $region12: #{tpu_custom_call.1} parent=1 // pred_region
      %1490 = vsyncadd [#allocation3], 0
      %s1492 = sshll.u32 [#allocation2], 4
      %s1493 = int_to_ptr.vmem [resolvable:$true] %s1492
      %s1494 = sshll.u32 %s2, 4
      %s1495 = int_to_ptr.hbm [resolvable:$true] %s1494
      %1497 = dma.vmem_to_hbm [thread:$0]  %s1493, 128, %s1495, [#allocation3]
    $region13: #{tpu_custom_call.1} parent=1 // pred_fallthru
      _
    // Predicated region
    $region14: #{tpu_custom_call.1} parent=1 // pred_check
      _
    $region15: #{tpu_custom_call.1} parent=1 // pred_check_branch
      %1499 = sbr.rel (0) target = $region17
    $region16: #{tpu_custom_call.1} parent=1 // pred_region
      %1501 = dma.done [#allocation3], 128
    $region17: #{tpu_custom_call.1} parent=1 // pred_fallthru
      _
    %1502 = vsyncpa [#allocation3], 1

</llo_original>
